<compile_context>
chip_gen: v6e
topology: v6e:2x2x1
jax: 0.10.0
libtpu: 0.0.40
codegen_flags: <defaults>
</compile_context>

<pallas_src>
import numpy as np

import jax
import jax.numpy as jnp
from jax import lax
from jax.experimental import pallas as pl
from jax.experimental.pallas import tpu as pltpu


def _triplet_tile_kernel(xr_ref, xa_ref, sqc_ref, sqt_ref, lr_ref, lc_ref,
                         ap_ref, an_ref):
    tm = xr_ref.shape[0]
    k = ap_ref.shape[0]

    x_t = xr_ref[...]                                    # (TM, D) anchors, native dtype
    x_all = xa_ref[...]                                  # (N,  D) keys, resident

    # Full-column Gram slab: one MXU pass, contract D of both operands (no x.T copy).
    gram = lax.dot_general(x_t, x_all, (((1,), (1,)), ((), ())),
                           preferred_element_type=jnp.float32)          # (TM, N) f32

    # Squared norms: rows via a cheap lane reduce, columns precomputed lane-oriented.
    xf = x_t.astype(jnp.float32)
    sq_r = jnp.sum(xf * xf, axis=1, keepdims=True)                      # (TM, 1)
    sq_c = sqc_ref[...]                                                 # (1, N)
    d2 = sq_r + sq_c - 2.0 * gram                                       # (TM, N)

    # Semi-hard negative: min over squared distances to different-label columns,
    # sqrt only the (TM, 1) result.
    same = lr_ref[...] == lc_ref[...]                                   # (TM, N)
    min_neg = jnp.min(jnp.where(same, jnp.inf, d2), axis=1, keepdims=True)
    an_ref[...] = jnp.sqrt(jnp.maximum(min_neg, 1e-12))

    # Positives: per-identity K x K blocks = block-diagonal of the in-tile square.
    # One full-width MXU pass on the already-loaded tile (no extra DMA, no tiny
    # per-identity matmuls, no dynamic lane-offset slicing of the big slab).
    gram_self = lax.dot_general(x_t, x_t, (((1,), (1,)), ((), ())),
                                preferred_element_type=jnp.float32)     # (TM, TM)
    d2_self = sq_r + sqt_ref[...] - 2.0 * gram_self                     # (TM, TM)

    blocks = []
    for g in range(tm // k):
        blk = d2_self[g * k:(g + 1) * k, g * k:(g + 1) * k]             # static slices
        blocks.append(jnp.sqrt(jnp.maximum(blk, 1e-12)))
    # Lane-dense (K, TM) slab: column a holds distances from anchor a to the K members
    # of its own identity group (distance is symmetric, so no transpose is needed).
    ap_ref[...] = jnp.concatenate(blocks, axis=1)


def _pick_row_tile(n, k):
    # 256-row tiles fill the v6e/v7x 2x256x256 MXU (128 already saturates v5e's 4x128^2).
    # Tile must divide N and be a multiple of K so every tile holds whole identity
    # groups; otherwise fall back to a single block. Do not split the D contraction.
    for tm in (256, 128):
        if n % tm == 0 and tm % k == 0:
            return tm
    return n


def triplet_loss(inputs, targets, *, K, margin=0.0):
    """TripletLoss forward (use_semi=True). Returns a scalar f32 loss."""
    n, d = inputs.shape
    assert K >= 2, "need num_instances >= 2 to form positive pairs"
    assert n % K == 0, "batch must be P identities x K instances"
    P = n // K
    assert P >= 2, "need at least 2 identities so every anchor has a negative"
    num_pairs = P * (K * (K - 1) // 2)

    # Host-side layout sanity check (structural positives assume contiguous PxK groups).
    # TODO(synk): under jit/traced targets this check is skipped; the contiguous-group
    # contract is documented but not enforced on-device.
    try:
        concrete = np.asarray(targets)
    except Exception:
        concrete = None
    if concrete is not None:
        tg = concrete.reshape(P, K)
        assert (tg == tg[:, :1]).all(), "targets must be grouped as P identities x K instances"

    TM = _pick_row_tile(n, K)
    num_tiles = n // TM

    t_row = targets.astype(jnp.int32).reshape(n, 1)
    t_col = targets.astype(jnp.int32).reshape(1, n)
    # Column squared norms precomputed lane-oriented (tiny O(N*D) op outside the kernel);
    # avoids any in-kernel (N,1)->(1,N) relayout and the old iota-diagonal extraction.
    xf32 = inputs.astype(jnp.float32)
    sq_1n = jnp.sum(xf32 * xf32, axis=1).reshape(1, n)

    # VMEM budget: per-tile working set, clamped to ~85% of the real hardware capacity
    # (v7x has only 64 MiB per TensorCore; v5e/v6e have 128 MiB).
    itm = jnp.dtype(inputs.dtype).itemsize
    need = (2 * n * d * itm            # resident keys (+ buffering slack)
            + 2 * TM * d * itm         # double-buffered anchor tile
            + TM * d * 4               # f32 copy for the row-norm reduce
            + 5 * TM * n * 4           # gram / d2 / masked-min temporaries
            + 2 * TM * TM * 4          # in-tile self gram / d2
            + 2 * (K * TM + TM) * 4    # double-buffered outputs
            + 4 * n * 4)               # norms + labels
    try:
        cap = int(pltpu.get_tpu_info().vmem_capacity_bytes)
    except Exception:
        cap = 64 * 1024 * 1024
    vmem_limit = int(min(int(0.85 * cap), max(32 * 1024 * 1024, 2 * need)))
    # TODO(synk): for batches where 2*need exceeds ~85% of VMEM, additionally tile the
    # key (column) axis with an "arbitrary" grid dim and carry the running min in scratch.

    dist_ap, dist_an = pl.pallas_call(
        _triplet_tile_kernel,
        out_shape=(jax.ShapeDtypeStruct((K, n), jnp.float32),
                   jax.ShapeDtypeStruct((n, 1), jnp.float32)),
        grid=(num_tiles,),
        in_specs=[
            pl.BlockSpec((TM, d), lambda i: (i, 0)),   # anchor rows of this tile
            pl.BlockSpec((n, d), lambda i: (0, 0)),    # all keys, resident
            pl.BlockSpec((1, n), lambda i: (0, 0)),    # column norms, resident
            pl.BlockSpec((1, TM), lambda i: (0, i)),   # this tile's norms (lane-oriented)
            pl.BlockSpec((TM, 1), lambda i: (i, 0)),   # anchor labels
            pl.BlockSpec((1, n), lambda i: (0, 0)),    # all labels, resident
        ],
        out_specs=(
            pl.BlockSpec((K, TM), lambda i: (0, i)),   # dist_ap, lane-dense
            pl.BlockSpec((TM, 1), lambda i: (i, 0)),   # dist_an
        ),
        compiler_params=pltpu.CompilerParams(
            dimension_semantics=("parallel",),
            vmem_limit_bytes=vmem_limit),
    )(inputs, inputs, sq_1n, sq_1n, t_row, t_col)

    # O(N*K) epilogue of MarginRankingLoss(dist_an, dist_ap, y=1), reduced in JAX.
    an_row = dist_an.reshape(1, n)
    member = jnp.arange(K, dtype=jnp.int32)[:, None]          # (K, 1) in-group member idx
    anchor = (jnp.arange(n, dtype=jnp.int32) % K)[None, :]    # (1, N) anchor's in-group idx
    pair_mask = member > anchor                                # pair index > anchor index
    hinge = jnp.maximum(dist_ap - an_row + margin, 0.0)
    loss = jnp.sum(jnp.where(pair_mask, hinge, 0.0)) * (1.0 / num_pairs)
    return loss


def _reference(inputs, targets, K, margin):
    # Pure-JAX reference reproducing the PyTorch forward (use_semi=True branch).
    x = jnp.asarray(inputs, jnp.float32)
    n = x.shape[0]
    sq = jnp.sum(x * x, axis=1, keepdims=True)
    gram = lax.dot_general(x, x, (((1,), (1,)), ((), ())),
                           precision=lax.Precision.HIGHEST,
                           preferred_element_type=jnp.float32)
    dist = jnp.sqrt(jnp.maximum(sq + sq.T - 2.0 * gram, 1e-12))
    same = targets[:, None] == targets[None, :]
    min_neg = jnp.min(jnp.where(same, jnp.inf, dist), axis=1)
    ap, an = [], []
    P = n // K
    for i in range(P):
        for j in range(K):
            a = i * K + j
            for p in range(j + 1, K):
                ap.append(dist[a, i * K + p])
                an.append(min_neg[a])
    ap = jnp.stack(ap)
    an = jnp.stack(an)
    return jnp.mean(jnp.maximum(ap - an + margin, 0.0))


if __name__ == "__main__":
    key = jax.random.PRNGKey(0)
    P, K, D = 2, 8, 128
    N = P * K
    margin = 0.3

    inputs = jax.random.normal(key, (N, D), dtype=jnp.float32)
    # Batch structured as P identities x K instances (PK sampling), as the module assumes.
    targets = jnp.repeat(jnp.arange(P, dtype=jnp.int32), K)

    loss = jax.block_until_ready(triplet_loss(inputs, targets, K=K, margin=margin))

    ref = _reference(inputs, targets, K, margin)
    assert jnp.allclose(loss, ref, atol=1e-4, rtol=1e-4), (loss, ref)
    print("KERNEL_OK")
</pallas_src>

<mosaic_0001>
module attributes {stable_mosaic.version = 11 : i64} {
  func.func @_triplet_tile_kernel(%arg0: i32, %arg1: memref<16x128xf32, #tpu.memory_space<vmem>>, %arg2: memref<16x128xf32, #tpu.memory_space<vmem>>, %arg3: memref<1x16xf32, #tpu.memory_space<vmem>>, %arg4: memref<1x16xf32, #tpu.memory_space<vmem>>, %arg5: memref<16x1xi32, #tpu.memory_space<vmem>>, %arg6: memref<1x16xi32, #tpu.memory_space<vmem>>, %arg7: memref<8x16xf32, #tpu.memory_space<vmem>>, %arg8: memref<16x1xf32, #tpu.memory_space<vmem>>) attributes {dimension_semantics = [#tpu.dimension_semantics<parallel>], iteration_bounds = array<i64: 1>, scalar_prefetch = 0 : i64, scratch_operands = 0 : i64, tpu.core_type = #tpu.core_type<tc>, window_params = [{transform_indices = @transform_0, window_bounds = array<i64: 16, 128>}, {pipeline_mode = #tpu.pipeline_mode<synchronous>, transform_indices = @transform_1, window_bounds = array<i64: 16, 128>}, {pipeline_mode = #tpu.pipeline_mode<synchronous>, transform_indices = @transform_2, window_bounds = array<i64: 1, 16>}, {transform_indices = @transform_3, window_bounds = array<i64: 1, 16>}, {transform_indices = @transform_4, window_bounds = array<i64: 16, 1>}, {pipeline_mode = #tpu.pipeline_mode<synchronous>, transform_indices = @transform_5, window_bounds = array<i64: 1, 16>}, {transform_indices = @transform_6, window_bounds = array<i64: 8, 16>}, {transform_indices = @transform_7, window_bounds = array<i64: 16, 1>}]} {
    %c0 = arith.constant 0 : index
    %c0_0 = arith.constant 0 : index
    %0 = vector.load %arg1[%c0, %c0_0] : memref<16x128xf32, #tpu.memory_space<vmem>>, vector<16x128xf32>
    %c0_1 = arith.constant 0 : index
    %c0_2 = arith.constant 0 : index
    %1 = vector.load %arg2[%c0_1, %c0_2] : memref<16x128xf32, #tpu.memory_space<vmem>>, vector<16x128xf32>
    %cst = arith.constant dense<0.000000e+00> : vector<16x16xf32>
    %2 = tpu.matmul %0, %1, %cst {dimension_numbers = #tpu.dot_dimension_numbers<[1], [1], [0], [0], [0, 0, 1, 0], [], []>} : vector<16x128xf32>, vector<16x128xf32>, vector<16x16xf32> -> vector<16x16xf32>
    %3 = arith.mulf %0, %0 : vector<16x128xf32>
    %cst_3 = arith.constant dense<0.000000e+00> : vector<16xf32>
    %4 = vector.multi_reduction <add>, %3, %cst_3 [1] : vector<16x128xf32> to vector<16xf32>
    %5 = vector.shape_cast %4 : vector<16xf32> to vector<16x1xf32>
    %c0_4 = arith.constant 0 : index
    %c0_5 = arith.constant 0 : index
    %6 = vector.load %arg3[%c0_4, %c0_5] : memref<1x16xf32, #tpu.memory_space<vmem>>, vector<1x16xf32>
    %7 = vector.broadcast %5 : vector<16x1xf32> to vector<16x16xf32>
    %8 = vector.broadcast %6 : vector<1x16xf32> to vector<16x16xf32>
    %9 = arith.addf %7, %8 : vector<16x16xf32>
    %cst_6 = arith.constant 2.000000e+00 : f32
    %10 = vector.broadcast %cst_6 : f32 to vector<16x16xf32>
    %11 = arith.mulf %10, %2 : vector<16x16xf32>
    %12 = arith.subf %9, %11 : vector<16x16xf32>
    %c0_7 = arith.constant 0 : index
    %c0_8 = arith.constant 0 : index
    %13 = vector.load %arg5[%c0_7, %c0_8] : memref<16x1xi32, #tpu.memory_space<vmem>>, vector<16x1xi32>
    %c0_9 = arith.constant 0 : index
    %c0_10 = arith.constant 0 : index
    %14 = vector.load %arg6[%c0_9, %c0_10] : memref<1x16xi32, #tpu.memory_space<vmem>>, vector<1x16xi32>
    %15 = vector.broadcast %13 : vector<16x1xi32> to vector<16x16xi32>
    %16 = vector.broadcast %14 : vector<1x16xi32> to vector<16x16xi32>
    %17 = arith.cmpi eq, %15, %16 : vector<16x16xi32>
    %cst_11 = arith.constant 0x7F800000 : f32
    %18 = vector.broadcast %cst_11 : f32 to vector<16x16xf32>
    %19 = arith.select %17, %18, %12 : vector<16x16xi1>, vector<16x16xf32>
    %cst_12 = arith.constant dense<0x7F800000> : vector<16xf32>
    %20 = vector.multi_reduction <minimumf>, %19, %cst_12 [1] : vector<16x16xf32> to vector<16xf32>
    %21 = vector.shape_cast %20 : vector<16xf32> to vector<16x1xf32>
    %cst_13 = arith.constant 9.99999996E-13 : f32
    %22 = vector.broadcast %cst_13 : f32 to vector<16x1xf32>
    %23 = arith.maximumf %21, %22 : vector<16x1xf32>
    %24 = math.sqrt %23 : vector<16x1xf32>
    %c0_14 = arith.constant 0 : index
    %c0_15 = arith.constant 0 : index
    %25 = vector.load %arg8[%c0_14, %c0_15] : memref<16x1xf32, #tpu.memory_space<vmem>>, vector<16x1xf32>
    tpu.vector_store %arg8[%c0_14, %c0_15], %24 {strides = array<i32>} : memref<16x1xf32, #tpu.memory_space<vmem>>, vector<16x1xf32>,
    %cst_16 = arith.constant dense<0.000000e+00> : vector<16x16xf32>
    %26 = tpu.matmul %0, %0, %cst_16 {dimension_numbers = #tpu.dot_dimension_numbers<[1], [1], [0], [0], [0, 0, 1, 0], [], []>} : vector<16x128xf32>, vector<16x128xf32>, vector<16x16xf32> -> vector<16x16xf32>
    %c0_17 = arith.constant 0 : index
    %c0_18 = arith.constant 0 : index
    %27 = vector.load %arg4[%c0_17, %c0_18] : memref<1x16xf32, #tpu.memory_space<vmem>>, vector<1x16xf32>
    %28 = vector.broadcast %5 : vector<16x1xf32> to vector<16x16xf32>
    %29 = vector.broadcast %27 : vector<1x16xf32> to vector<16x16xf32>
    %30 = arith.addf %28, %29 : vector<16x16xf32>
    %cst_19 = arith.constant 2.000000e+00 : f32
    %31 = vector.broadcast %cst_19 : f32 to vector<16x16xf32>
    %32 = arith.mulf %31, %26 : vector<16x16xf32>
    %33 = arith.subf %30, %32 : vector<16x16xf32>
    %34 = vector.extract_strided_slice %33 {offsets = [0, 0], sizes = [8, 8], strides = [1, 1]} : vector<16x16xf32> to vector<8x8xf32>
    %cst_20 = arith.constant 9.99999996E-13 : f32
    %35 = vector.broadcast %cst_20 : f32 to vector<8x8xf32>
    %36 = arith.maximumf %34, %35 : vector<8x8xf32>
    %37 = math.sqrt %36 : vector<8x8xf32>
    %38 = vector.extract_strided_slice %33 {offsets = [8, 8], sizes = [8, 8], strides = [1, 1]} : vector<16x16xf32> to vector<8x8xf32>
    %cst_21 = arith.constant 9.99999996E-13 : f32
    %39 = vector.broadcast %cst_21 : f32 to vector<8x8xf32>
    %40 = arith.maximumf %38, %39 : vector<8x8xf32>
    %41 = math.sqrt %40 : vector<8x8xf32>
    %42 = tpu.concatenate %37, %41 in 1 : vector<8x8xf32>, vector<8x8xf32> -> vector<8x16xf32>
    %c0_22 = arith.constant 0 : index
    %c0_23 = arith.constant 0 : index
    %43 = vector.load %arg7[%c0_22, %c0_23] : memref<8x16xf32, #tpu.memory_space<vmem>>, vector<8x16xf32>
    tpu.vector_store %arg7[%c0_22, %c0_23], %42 {strides = array<i32>} : memref<8x16xf32, #tpu.memory_space<vmem>>, vector<8x16xf32>,
    return
  }
  func.func @transform_0(%arg0: i32) -> (i32, i32) {
    %c0_i32 = arith.constant 0 : i32
    %c0_i32_0 = arith.constant 0 : i32
    return %arg0, %c0_i32 : i32, i32
  }
  func.func @transform_1(%arg0: i32) -> (i32, i32) {
    %c0_i32 = arith.constant 0 : i32
    %c0_i32_0 = arith.constant 0 : i32
    %c0_i32_1 = arith.constant 0 : i32
    return %c0_i32, %c0_i32_0 : i32, i32
  }
  func.func @transform_2(%arg0: i32) -> (i32, i32) {
    %c0_i32 = arith.constant 0 : i32
    %c0_i32_0 = arith.constant 0 : i32
    %c0_i32_1 = arith.constant 0 : i32
    return %c0_i32, %c0_i32_0 : i32, i32
  }
  func.func @transform_3(%arg0: i32) -> (i32, i32) {
    %c0_i32 = arith.constant 0 : i32
    %c0_i32_0 = arith.constant 0 : i32
    return %c0_i32, %arg0 : i32, i32
  }
  func.func @transform_4(%arg0: i32) -> (i32, i32) {
    %c0_i32 = arith.constant 0 : i32
    %c0_i32_0 = arith.constant 0 : i32
    return %arg0, %c0_i32 : i32, i32
  }
  func.func @transform_5(%arg0: i32) -> (i32, i32) {
    %c0_i32 = arith.constant 0 : i32
    %c0_i32_0 = arith.constant 0 : i32
    %c0_i32_1 = arith.constant 0 : i32
    return %c0_i32, %c0_i32_0 : i32, i32
  }
  func.func @transform_6(%arg0: i32) -> (i32, i32) {
    %c0_i32 = arith.constant 0 : i32
    %c0_i32_0 = arith.constant 0 : i32
    return %c0_i32, %arg0 : i32, i32
  }
  func.func @transform_7(%arg0: i32) -> (i32, i32) {
    %c0_i32 = arith.constant 0 : i32
    %c0_i32_0 = arith.constant 0 : i32
    return %arg0, %c0_i32 : i32, i32
  }
}

</mosaic_0001>

<llo_original>
// kernel: tpu_custom_call.1
$region0: #{tpu_custom_call.1}
  #allocation0 [shape = 'u32[]', space=smem, size = 0x4, offset = 0x4, fixed_abs, tag = 'smem constant byte address 0x4 - core index']
  #allocation1 [shape = 'u32[144,128]{1,0:T(1,128)}', space=vmem, size = 0x12000, scoped, tag = 'internal scratch']
  %s0 = inlined_call_operand.vmem [shape: f32[16,128], index: 0, kind: input, shape index: {}]
  %s1 = inlined_call_operand.hbm [shape: f32[16,128], index: 1, kind: input, shape index: {}]
  %s2 = inlined_call_operand.vmem [shape: f32[1,16], index: 2, kind: input, shape index: {}]
  %s3 = inlined_call_operand.vmem [shape: f32[1,16], index: 3, kind: input, shape index: {}]
  %s4 = inlined_call_operand.vmem [shape: s32[16,1], index: 4, kind: input, shape index: {}]
  %s5 = inlined_call_operand.vmem [shape: s32[1,16], index: 5, kind: input, shape index: {}]
  %s6 = inlined_call_operand.hbm [shape: f32[8,16], index: 6, kind: output, shape index: {0}]
  %s7 = inlined_call_operand.vmem [shape: f32[16,1], index: 7, kind: output, shape index: {1}]
  %8 = xla_tuple %s6, %s7
  %s9 = sld [smem:[#allocation0]]
  $region46: #{tpu_custom_call.1} parent=0
    _
  %s11 = ssub.s32 1, %s9
  %s12 = scalar_select 0, %s11, %s9
  $region1: #{tpu_custom_call.1} parent=0
    #allocation2 [shape = 'u8[8192]{0}', space=vmem, size = 0x2000, scoped, tag = 'input window, operand 1, single buffered']
    #allocation3 [shape = 's32[1]{0}', space=sflag, size = 0x4, scoped, tag = 'scoped memory for tpu_custom_call.1']
    #allocation4 [shape = 's32[1]{0}', space=sflag, size = 0x4, scoped, tag = 'scoped memory for tpu_custom_call.1']
    #allocation5 [shape = 'u8[4096]{0}', space=vmem, size = 0x1000, scoped, tag = 'output window, operand 0, single buffered']
    %13 = vsyncpa [#allocation3], 0
    %14 = vsyncpa [#allocation4], 0
    // Predicated region
    $region2: #{tpu_custom_call.1} parent=1 // pred_check
      _
    $region3: #{tpu_custom_call.1} parent=1 // pred_check_branch
      %16 = sbr.rel (0) target = $region5
    $region4: #{tpu_custom_call.1} parent=1 // pred_region
      _
    $region5: #{tpu_custom_call.1} parent=1 // pred_fallthru
      _
    // Predicated region
    $region6: #{tpu_custom_call.1} parent=1 // pred_check
      _
    $region7: #{tpu_custom_call.1} parent=1 // pred_check_branch
      %18 = sbr.rel (0) target = $region9
    $region8: #{tpu_custom_call.1} parent=1 // pred_region
      %s20 = ssub.s32 256, 256
      %21 = vsyncadd [#allocation3], %s20
      %s22 = sshll.u32 [#allocation2], 4
      %s23 = int_to_ptr.vmem [resolvable:$true] %s22
      %28 = dma.hbm_to_vmem [thread:$0]  %s1, 256, %s23, [#allocation3], 128, 128, 8
    $region9: #{tpu_custom_call.1} parent=1 // pred_fallthru
      _
    // Predicated region
    $region10: #{tpu_custom_call.1} parent=1 // pred_check
      _
    $region11: #{tpu_custom_call.1} parent=1 // pred_check_branch
      %30 = sbr.rel (0) target = $region13
    $region12: #{tpu_custom_call.1} parent=1 // pred_region
      _
    $region13: #{tpu_custom_call.1} parent=1 // pred_fallthru
      _
    // Predicated region
    $region14: #{tpu_custom_call.1} parent=1 // pred_check
      _
    $region15: #{tpu_custom_call.1} parent=1 // pred_check_branch
      %32 = sbr.rel (0) target = $region17
    $region16: #{tpu_custom_call.1} parent=1 // pred_region
      _
    $region17: #{tpu_custom_call.1} parent=1 // pred_fallthru
      _
    // Predicated region
    $region18: #{tpu_custom_call.1} parent=1 // pred_check
      _
    $region19: #{tpu_custom_call.1} parent=1 // pred_check_branch
      %34 = sbr.rel (0) target = $region21
    $region20: #{tpu_custom_call.1} parent=1 // pred_region
      _
    $region21: #{tpu_custom_call.1} parent=1 // pred_fallthru
      _
    // Predicated region
    $region22: #{tpu_custom_call.1} parent=1 // pred_check
      _
    $region23: #{tpu_custom_call.1} parent=1 // pred_check_branch
      %36 = sbr.rel (0) target = $region25
    $region24: #{tpu_custom_call.1} parent=1 // pred_region
      _
    $region25: #{tpu_custom_call.1} parent=1 // pred_fallthru
      _
    // Predicated region
    $region26: #{tpu_custom_call.1} parent=1 // pred_check
      _
    $region27: #{tpu_custom_call.1} parent=1 // pred_check_branch
      %38 = sbr.rel (0) target = $region29
    $region28: #{tpu_custom_call.1} parent=1 // pred_region
      %39 = dma.done [#allocation3], 256
    $region29: #{tpu_custom_call.1} parent=1 // pred_fallthru
      _
    %v40 = vld [vmem:[%s0] sm:$0xff]
    %v41 = vld [vmem:[%s0 + $0x8] sm:$0xff]
    %v42 = vld [vmem:[#allocation2] sm:$0xff]
    %v43 = vld [vmem:[#allocation2 + $0x8] sm:$0xff]
    %44 = vmatprep.subr.mxu0 0.0
    %45 = vmatpush1.xpose.msra.mxu0 0.0
    %46 = vmatprep.subr.mxu0 0.0
    %47 = vmatpush1.xpose.msra.mxu0 0.0
    %48 = vmatprep.subr.mxu0 0.0
    %49 = vmatpush1.xpose.msra.mxu0 0.0
    %50 = vmatprep.subr.mxu0 0.0
    %51 = vmatpush1.xpose.msra.mxu0 0.0
    %52 = vmatprep.subr.mxu0 0.0
    %53 = vmatpush1.xpose.msra.mxu0 0.0
    %54 = vmatprep.subr.mxu0 0.0
    %55 = vmatpush1.xpose.msra.mxu0 0.0
    %56 = vmatprep.subr.mxu0 0.0
    %57 = vmatpush1.xpose.msra.mxu0 0.0
    %58 = vmatprep.subr.mxu0 0.0
    %59 = vmatpush1.xpose.msra.mxu0 0.0
    %60 = vmatprep.subr.mxu0 0.0
    %61 = vmatpush1.xpose.msra.mxu0 0.0
    %62 = vmatprep.subr.mxu0 0.0
    %63 = vmatpush1.xpose.msra.mxu0 0.0
    %64 = vmatprep.subr.mxu0 0.0
    %65 = vmatpush1.xpose.msra.mxu0 0.0
    %66 = vmatprep.subr.mxu0 0.0
    %67 = vmatpush1.xpose.msra.mxu0 0.0
    %68 = vmatprep.subr.mxu0 0.0
    %69 = vmatpush1.xpose.msra.mxu0 0.0
    %70 = vmatprep.subr.mxu0 0.0
    %71 = vmatpush1.xpose.msra.mxu0 0.0
    %72 = vmatprep.subr.mxu0 0.0
    %73 = vmatpush1.xpose.msra.mxu0 %v43
    %74 = vmatprep.subr.mxu0 0.0
    %75 = vmatpush1.xpose.msra.mxu0 %v42
    %76 = vmatprep.subr.mxu0 0.0
    %77 = vmatpush2.xpose.msra.mxu0 0.0
    %78 = vmatprep.subr.mxu0 0.0
    %79 = vmatpush2.xpose.msra.mxu0 0.0
    %80 = vmatprep.subr.mxu0 0.0
    %81 = vmatpush2.xpose.msra.mxu0 0.0
    %82 = vmatprep.subr.mxu0 0.0
    %83 = vmatpush2.xpose.msra.mxu0 0.0
    %84 = vmatprep.subr.mxu0 0.0
    %85 = vmatpush2.xpose.msra.mxu0 0.0
    %86 = vmatprep.subr.mxu0 0.0
    %87 = vmatpush2.xpose.msra.mxu0 0.0
    %88 = vmatprep.subr.mxu0 0.0
    %89 = vmatpush2.xpose.msra.mxu0 0.0
    %90 = vmatprep.subr.mxu0 0.0
    %91 = vmatpush2.xpose.msra.mxu0 0.0
    %92 = vmatprep.subr.mxu0 0.0
    %93 = vmatpush2.xpose.msra.mxu0 0.0
    %94 = vmatprep.subr.mxu0 0.0
    %95 = vmatpush2.xpose.msra.mxu0 0.0
    %96 = vmatprep.subr.mxu0 0.0
    %97 = vmatpush2.xpose.msra.mxu0 0.0
    %98 = vmatprep.subr.mxu0 0.0
    %99 = vmatpush2.xpose.msra.mxu0 0.0
    %100 = vmatprep.subr.mxu0 0.0
    %101 = vmatpush2.xpose.msra.mxu0 0.0
    %102 = vmatprep.subr.mxu0 0.0
    %103 = vmatpush2.xpose.msra.mxu0 0.0
    %104 = vmatprep.subr.mxu0 0.0
    %105 = vmatpush2.xpose.msra.mxu0 0.0
    %106 = vmatprep.subr.mxu0 0.0
    %107 = vmatpush2.xpose.msra.mxu0 0.0
    %108 = vmatprep.mubr.f32.mxu0 0.0
    %109 = vmatmul.mubr.f32.gmra.mxu0 %v40
    %v110 = vpop.f32.mrf.mxu0
    %v111 = vadd.f32 0.0, %v110
    %v112 = vpop.f32.mrf.mxu0
    %113 = vmatprep.mubr.f32.mxu0 0.0
    %114 = vmatmul.mubr.f32.gmra.mxu0 %v41
    %v115 = vpop.f32.mrf.mxu0
    %v116 = vadd.f32 0.0, %v115
    %v117 = vpop.f32.mrf.mxu0
    %118 = vdwg.mxu0
    %v119 = vmul.f32 %v40, %v40
    %v120 = vmul.f32 %v41, %v41
    %121 = vadd.xlane.f32.xlu0 %v119
    %v122 = vpop.xlane.xlu0 %121
    %123 = vadd.xlane.f32.xlu0 %v120
    %v124 = vpop.xlane.xlu0 %123
    %v125 = vld [vmem:[%s2] sm:$0x1]
    %v127 = vlaneseq
    %v128 = vshrl.u32 %v127, 7
    %v129 = vsub.s32 0, %v128
    %v130 = vrot.slane %v125, %v129
    %v132 = vadd.f32 %v122, %v130
    %v133 = vadd.f32 %v124, %v130
    %v134 = vmul.f32 %v111, 2.0
    %v135 = vmul.f32 %v116, 2.0
    %v136 = vsub.f32 %v132, %v134
    %v137 = vsub.f32 %v133, %v135
    %v138 = vld [vmem:[%s4] sm:$0xff]
    %v139 = vld [vmem:[%s4 + $0x8] sm:$0xff]
    %v140 = vld [vmem:[%s5] sm:$0x1]
    %141 = vset.pattern.permute.xlu0 0
    %142 = vperm.xlu0 %141, %v138
    %v143 = vpop.permute.xlu0 %142
    %144 = vset.pattern.permute.xlu0 0
    %145 = vperm.xlu0 %144, %v139
    %v146 = vpop.permute.xlu0 %145
    %v147 = vlaneseq
    %v148 = vshrl.u32 %v147, 7
    %v149 = vsub.s32 0, %v148
    %v150 = vrot.slane %v140, %v149
    %vm151 = vcmp.eq.s32.totalorder %v143, %v150
    %vm152 = vcmp.eq.s32.totalorder %v146, %v150
    %v153 = vsel %vm151, inf, %v136
    %v154 = vsel %vm152, inf, %v137
    %vm155 = vcmask 130048
    %v156 = vsel %vm155, %v153, inf
    %157 = vmin.xlane.f32.xlu0 %v156
    %v158 = vpop.xlane.xlu0 %157
    %v159 = vsel %vm155, %v154, inf
    %160 = vmin.xlane.f32.xlu0 %v159
    %v161 = vpop.xlane.xlu0 %160
    %v162 = vmax.f32 %v158, 1e-12
    %v163 = vmax.f32 %v161, 1e-12
    %v164 = vrsqrt.pop %v162
    %v165 = vmul.f32 %v162, %v164
    %vm166 = vcmp.eq.f32.partialorder %v162, inf
    %v167 = vsel %vm166, %v162, %v165
    %vm168 = vcmp.eq.f32.partialorder %v162, 0.0
    %v169 = vand.u32 %v162, 2147483648
    %v170 = vsel %vm168, %v169, %v167
    %v171 = vrsqrt.pop %v163
    %v172 = vmul.f32 %v163, %v171
    %vm173 = vcmp.eq.f32.partialorder %v163, inf
    %v174 = vsel %vm173, %v163, %v172
    %vm175 = vcmp.eq.f32.partialorder %v163, 0.0
    %v176 = vand.u32 %v163, 2147483648
    %v177 = vsel %vm175, %v176, %v174
    %vm178 = vcmask 7168
    %179 = vst.msk [vmem:[%s7] sm:$0xff] %vm178, %v170
    %180 = vst.msk [vmem:[%s7 + $0x8] sm:$0xff] %vm178, %v177
    %181 = vmatprep.subr.mxu0 0.0
    %182 = vmatpush1.xpose.msra.mxu0 0.0
    %183 = vmatprep.subr.mxu0 0.0
    %184 = vmatpush1.xpose.msra.mxu0 0.0
    %185 = vmatprep.subr.mxu0 0.0
    %186 = vmatpush1.xpose.msra.mxu0 0.0
    %187 = vmatprep.subr.mxu0 0.0
    %188 = vmatpush1.xpose.msra.mxu0 0.0
    %189 = vmatprep.subr.mxu0 0.0
    %190 = vmatpush1.xpose.msra.mxu0 0.0
    %191 = vmatprep.subr.mxu0 0.0
    %192 = vmatpush1.xpose.msra.mxu0 0.0
    %193 = vmatprep.subr.mxu0 0.0
    %194 = vmatpush1.xpose.msra.mxu0 0.0
    %195 = vmatprep.subr.mxu0 0.0
    %196 = vmatpush1.xpose.msra.mxu0 0.0
    %197 = vmatprep.subr.mxu0 0.0
    %198 = vmatpush1.xpose.msra.mxu0 0.0
    %199 = vmatprep.subr.mxu0 0.0
    %200 = vmatpush1.xpose.msra.mxu0 0.0
    %201 = vmatprep.subr.mxu0 0.0
    %202 = vmatpush1.xpose.msra.mxu0 0.0
    %203 = vmatprep.subr.mxu0 0.0
    %204 = vmatpush1.xpose.msra.mxu0 0.0
    %205 = vmatprep.subr.mxu0 0.0
    %206 = vmatpush1.xpose.msra.mxu0 0.0
    %207 = vmatprep.subr.mxu0 0.0
    %208 = vmatpush1.xpose.msra.mxu0 0.0
    %209 = vmatprep.subr.mxu0 0.0
    %210 = vmatpush1.xpose.msra.mxu0 %v41
    %211 = vmatprep.subr.mxu0 0.0
    %212 = vmatpush1.xpose.msra.mxu0 %v40
    %213 = vmatprep.subr.mxu0 0.0
    %214 = vmatpush2.xpose.msra.mxu0 0.0
    %215 = vmatprep.subr.mxu0 0.0
    %216 = vmatpush2.xpose.msra.mxu0 0.0
    %217 = vmatprep.subr.mxu0 0.0
    %218 = vmatpush2.xpose.msra.mxu0 0.0
    %219 = vmatprep.subr.mxu0 0.0
    %220 = vmatpush2.xpose.msra.mxu0 0.0
    %221 = vmatprep.subr.mxu0 0.0
    %222 = vmatpush2.xpose.msra.mxu0 0.0
    %223 = vmatprep.subr.mxu0 0.0
    %224 = vmatpush2.xpose.msra.mxu0 0.0
    %225 = vmatprep.subr.mxu0 0.0
    %226 = vmatpush2.xpose.msra.mxu0 0.0
    %227 = vmatprep.subr.mxu0 0.0
    %228 = vmatpush2.xpose.msra.mxu0 0.0
    %229 = vmatprep.subr.mxu0 0.0
    %230 = vmatpush2.xpose.msra.mxu0 0.0
    %231 = vmatprep.subr.mxu0 0.0
    %232 = vmatpush2.xpose.msra.mxu0 0.0
    %233 = vmatprep.subr.mxu0 0.0
    %234 = vmatpush2.xpose.msra.mxu0 0.0
    %235 = vmatprep.subr.mxu0 0.0
    %236 = vmatpush2.xpose.msra.mxu0 0.0
    %237 = vmatprep.subr.mxu0 0.0
    %238 = vmatpush2.xpose.msra.mxu0 0.0
    %239 = vmatprep.subr.mxu0 0.0
    %240 = vmatpush2.xpose.msra.mxu0 0.0
    %241 = vmatprep.subr.mxu0 0.0
    %242 = vmatpush2.xpose.msra.mxu0 0.0
    %243 = vmatprep.subr.mxu0 0.0
    %244 = vmatpush2.xpose.msra.mxu0 0.0
    %245 = vmatprep.mubr.f32.mxu0 0.0
    %246 = vmatmul.mubr.f32.gmra.mxu0 %v40
    %v247 = vpop.f32.mrf.mxu0
    %v248 = vadd.f32 0.0, %v247
    %v249 = vpop.f32.mrf.mxu0
    %250 = vmatprep.mubr.f32.mxu0 0.0
    %251 = vmatmul.mubr.f32.gmra.mxu0 %v41
    %v252 = vpop.f32.mrf.mxu0
    %v253 = vadd.f32 0.0, %v252
    %v254 = vpop.f32.mrf.mxu0
    %255 = vdwg.mxu0
    %v256 = vld [vmem:[%s3] sm:$0x1]
    %v258 = vlaneseq
    %v259 = vshrl.u32 %v258, 7
    %v260 = vsub.s32 0, %v259
    %v261 = vrot.slane %v256, %v260
    %v263 = vadd.f32 %v122, %v261
    %v264 = vadd.f32 %v124, %v261
    %v265 = vmul.f32 %v248, 2.0
    %v266 = vmul.f32 %v253, 2.0
    %v267 = vsub.f32 %v263, %v265
    %v268 = vsub.f32 %v264, %v266
    %v269 = vmax.f32 %v267, 1e-12
    %v270 = vrsqrt.pop %v269
    %v271 = vmul.f32 %v269, %v270
    %vm272 = vcmp.eq.f32.partialorder %v269, inf
    %v273 = vsel %vm272, %v269, %v271
    %vm274 = vcmp.eq.f32.partialorder %v269, 0.0
    %v275 = vand.u32 %v269, 2147483648
    %v276 = vsel %vm274, %v275, %v273
    %v277 = vmax.f32 %v268, 1e-12
    %v278 = vrsqrt.pop %v277
    %v279 = vmul.f32 %v277, %v278
    %vm280 = vcmp.eq.f32.partialorder %v277, inf
    %v281 = vsel %vm280, %v277, %v279
    %vm282 = vcmp.eq.f32.partialorder %v277, 0.0
    %v283 = vand.u32 %v277, 2147483648
    %v284 = vsel %vm282, %v283, %v281
    %vm285 = vcmask 64512
    %v286 = vsel %vm285, %v276, %v284
    %287 = vst.msk [vmem:[#allocation5] sm:$0xff] %vm155, %v286
    // Predicated region
    $region30: #{tpu_custom_call.1} parent=1 // pred_check
      _
    $region31: #{tpu_custom_call.1} parent=1 // pred_check_branch
      %289 = sbr.rel (0) target = $region33
    $region32: #{tpu_custom_call.1} parent=1 // pred_region
      %s291 = ssub.s32 128, 128
      %292 = vsyncadd [#allocation4], %s291
      %s294 = sshll.u32 [#allocation5], 4
      %s295 = int_to_ptr.vmem [resolvable:$true] %s294
      %297 = dma.vmem_to_hbm [thread:$0]  %s295, 128, %s6, [#allocation4]
    $region33: #{tpu_custom_call.1} parent=1 // pred_fallthru
      _
    // Predicated region
    $region34: #{tpu_custom_call.1} parent=1 // pred_check
      _
    $region35: #{tpu_custom_call.1} parent=1 // pred_check_branch
      %299 = sbr.rel (0) target = $region37
    $region36: #{tpu_custom_call.1} parent=1 // pred_region
      _
    $region37: #{tpu_custom_call.1} parent=1 // pred_fallthru
      _
    // Predicated region
    $region38: #{tpu_custom_call.1} parent=1 // pred_check
      _
    $region39: #{tpu_custom_call.1} parent=1 // pred_check_branch
      %301 = sbr.rel (0) target = $region41
    $region40: #{tpu_custom_call.1} parent=1 // pred_region
      %302 = dma.done [#allocation4], 128
    $region41: #{tpu_custom_call.1} parent=1 // pred_fallthru
      _
    // Predicated region
    $region42: #{tpu_custom_call.1} parent=1 // pred_check
      _
    $region43: #{tpu_custom_call.1} parent=1 // pred_check_branch
      %304 = sbr.rel (0) target = $region45
    $region44: #{tpu_custom_call.1} parent=1 // pred_region
      _
    $region45: #{tpu_custom_call.1} parent=1 // pred_fallthru
      _
    %305 = vsyncpa [#allocation3], 1
    %306 = vsyncpa [#allocation4], 1

</llo_original>
